<compile_context>
chip_gen: v5e
topology: v5e:2x2
jax: 0.10.0
libtpu: 0.0.40
codegen_flags: <defaults>
</compile_context>

<pallas_src>
import functools

import numpy as np
import jax
import jax.numpy as jnp
from jax.experimental import pallas as pl
from jax.experimental.pallas import tpu as pltpu


def ceiling_div(x, y):
    return (x + y - 1) // y


# ----------------------------- Pallas kernel ------------------------------- #

def quant4_matmul_kernel(x_ref, qw_ref, sc_ref, zr_ref, b_ref, rs_ref,
                         o_ref, acc_ref, *,
                         mode, g_per_tile, gs, per_step_groups):
    # x_ref : (tm, tk)        bf16
    # qw_ref: (tk//8, tn)     int32 (packed 4-bit)
    # sc_ref: (g_per_tile|G, tn) f32
    # zr_ref: (g_per_tile|G, tn) f32
    # b_ref : (1, tn)         f32
    # rs_ref: (tm, 1)         f32  (full-K rowsum; used only in "g1" mode)
    # o_ref : (tm, tn)        x.dtype
    # acc_ref: (tm, tn)       f32 scratch accumulator (lives across the K axis)
    k = pl.program_id(2)
    nk = pl.num_programs(2)

    @pl.when(k == 0)
    def _init():
        acc_ref[...] = jnp.zeros_like(acc_ref)

    shifts = jax.lax.broadcasted_iota(jnp.uint32, (1, 8, 1), 1) * jnp.uint32(4)

    def unpack_group(gl, dtype):
        # 8 nibbles per int32 word along K; nibble s of packed row r is k=8r+s.
        gsp = gs // 8
        qw = pltpu.bitcast(qw_ref[gl * gsp:(gl + 1) * gsp, :], jnp.uint32)
        tn = qw.shape[-1]
        w = (qw[:, None, :] >> shifts) & jnp.uint32(0xF)
        return w.reshape(gsp * 8, tn).astype(dtype)                 # (gs, tn)

    acc = acc_ref[...]
    for gl in range(g_per_tile):                                    # static unroll
        x_g = x_ref[:, gl * gs:(gl + 1) * gs]                       # (tm, gs) bf16
        if mode == "g1":
            w_int = unpack_group(gl, jnp.bfloat16)                  # exact in bf16
            acc = acc + jnp.dot(x_g, w_int, preferred_element_type=jnp.float32)
        else:
            if per_step_groups:
                s = sc_ref[gl]                                      # (tn,) static idx
                z = zr_ref[gl]
            else:
                gidx = k * g_per_tile + gl
                s = sc_ref[gidx]
                z = zr_ref[gidx]
            if mode == "dequant":
                w_int = unpack_group(gl, jnp.float32)
                w_deq = (s * w_int - z).astype(jnp.bfloat16)        # f32 dequant, 1 cast
                acc = acc + jnp.dot(x_g, w_deq, preferred_element_type=jnp.float32)
            else:  # "epilogue" (decode: tm small)
                w_int = unpack_group(gl, jnp.bfloat16)
                p = jnp.dot(x_g, w_int, preferred_element_type=jnp.float32)
                rsum = jnp.sum(x_g.astype(jnp.float32), axis=1, keepdims=True)
                acc = acc + s * p - z * rsum
    acc_ref[...] = acc

    @pl.when(k == nk - 1)
    def _finalize():
        if mode == "g1":
            s = sc_ref[...]                                         # (1, tn)
            z = zr_ref[...]
            rs = rs_ref[...]                                        # (tm, 1)
            o_ref[...] = (s * acc_ref[...] - z * rs + b_ref[...]).astype(o_ref.dtype)
        else:
            o_ref[...] = (acc_ref[...] + b_ref[...]).astype(o_ref.dtype)


# ------------------------------ JAX wrapper -------------------------------- #

def quant_linear_forward(x, qweight, scales, zeros, bias, *, bit=4, groupsize=-1,
                         tm=None, tn=None, tk=None):
    """Forward of QuantLinear (bit=4). x: (..., K); returns (..., N) in x.dtype."""
    assert bit == 4, "only the 4-bit path is implemented"
    orig_shape = x.shape
    K = orig_shape[-1]
    N = qweight.shape[1]
    M = int(np.prod(orig_shape[:-1]))
    grouped = groupsize != -1
    G = 1 if not grouped else K // groupsize
    assert K % 8 == 0 and qweight.shape[0] == K // 8
    if grouped:
        assert K % groupsize == 0 and groupsize % 8 == 0

    # ---- tile selection ----------------------------------------------------
    if tn is None:
        tn = next((c for c in (512, 256, 128) if N % c == 0), N)
    assert N % tn == 0 and (tn % 128 == 0 or tn == N)

    if tm is None:
        m8 = ceiling_div(M, 8) * 8
        if m8 <= 512:
            tm = m8
        else:
            tm = next((c for c in (512, 256, 128) if M % c == 0), 256)
    assert tm % 8 == 0
    Mp = ceiling_div(M, tm) * tm                     # pad ragged M with zero rows

    if tk is None:
        unit = groupsize if grouped else 128
        tk = unit if K % unit == 0 else K
        cap = 2048 if M <= 32 else 1024              # decode: bigger weight tiles
        while tk * 2 <= min(K, cap) and K % (tk * 2) == 0:
            tk *= 2
    assert K % tk == 0 and (tk % 128 == 0 or tk == K)
    if grouped:
        assert tk % groupsize == 0, "K tile must align to group boundaries"
        gs, g_per_tile = groupsize, tk // groupsize
    else:
        gs, g_per_tile = tk, 1
    assert gs % 8 == 0

    # v7x has 2 TensorCores sharing the parallel grid axes: ensure >= 2
    # parallel blocks when possible.
    if (Mp // tm) * (N // tn) < 2:
        if tn % 256 == 0:
            tn //= 2
        elif tm % 16 == 0:
            tm //= 2

    nk = K // tk
    mode = "g1" if not grouped else ("dequant" if tm >= 128 else "epilogue")
    per_step_groups = grouped and (g_per_tile % 8 == 0 or g_per_tile == G)

    # ---- operand layout (bf16 activations, cast once here) -----------------
    out_dtype = x.dtype
    x2 = x.reshape(M, K).astype(jnp.bfloat16)
    if Mp != M:
        x2 = jnp.pad(x2, ((0, Mp - M), (0, 0)))
    if mode == "g1":
        rs = jnp.sum(x2.astype(jnp.float32), axis=1, keepdims=True)   # (Mp, 1)
    else:
        rs = jnp.zeros((Mp, 1), jnp.float32)                          # unused
    sc = jnp.asarray(scales, jnp.float32).reshape(N, G).T              # (G, N)
    zr = jnp.asarray(zeros, jnp.float32).reshape(N, G).T               # (G, N)
    if bias is None:
        b2 = jnp.zeros((1, N), jnp.float32)
    else:
        b2 = jnp.asarray(bias, jnp.float32).reshape(1, N)
    qw = jnp.asarray(qweight, jnp.int32)

    # ---- block specs --------------------------------------------------------
    if per_step_groups:
        sz_spec = pl.BlockSpec((g_per_tile, tn), lambda i, j, k: (k, j))
        sz_rows = g_per_tile
    else:
        sz_spec = pl.BlockSpec((G, tn), lambda i, j, k: (0, j))
        sz_rows = G

    qw_kwargs = {}
    if M <= 32 and nk >= 3:                           # DMA-bound decode: deeper pipe
        qw_kwargs["pipeline_mode"] = pl.Buffered(3)
    qw_spec = pl.BlockSpec((tk // 8, tn), lambda i, j, k: (k, j), **qw_kwargs)

    kernel = functools.partial(quant4_matmul_kernel, mode=mode,
                               g_per_tile=g_per_tile, gs=gs,
                               per_step_groups=per_step_groups)

    out_isz = np.dtype(out_dtype).itemsize
    cost = pl.CostEstimate(
        flops=2 * Mp * N * K, transcendentals=0,
        bytes_accessed=(Mp * K * 2 + (K // 8) * N * 4 + Mp * N * out_isz
                        + (2 * G + 1) * N * 4 + Mp * 4))

    # Rough double-buffered VMEM footprint; set an explicit scoped limit so the
    # larger tiles also compile on v5e (16 MiB default scoped limit).
    est = (2 * (tm * tk * 2 + (tk // 8) * tn * 4 + 2 * sz_rows * tn * 4
                + tn * 4 + tm * 4 + tm * tn * out_isz)
           + tm * tn * 4 + 12 * gs * tn)
    vmem_limit = int(min(64 << 20, max(32 << 20, 2 * est)))

    out = pl.pallas_call(
        kernel,
        out_shape=jax.ShapeDtypeStruct((Mp, N), out_dtype),
        grid_spec=pltpu.PrefetchScalarGridSpec(
            num_scalar_prefetch=0,
            grid=(Mp // tm, N // tn, nk),
            in_specs=[
                pl.BlockSpec((tm, tk), lambda i, j, k: (i, k)),
                qw_spec,
                sz_spec,
                sz_spec,
                pl.BlockSpec((1, tn), lambda i, j, k: (0, j)),
                pl.BlockSpec((tm, 1), lambda i, j, k: (i, 0)),
            ],
            out_specs=pl.BlockSpec((tm, tn), lambda i, j, k: (i, j)),
            scratch_shapes=[pltpu.VMEM((tm, tn), jnp.float32)],
        ),
        compiler_params=pltpu.CompilerParams(
            dimension_semantics=("parallel", "parallel", "arbitrary"),
            vmem_limit_bytes=vmem_limit),
        cost_estimate=cost,
    )(x2, qw, sc, zr, b2, rs)

    if Mp != M:
        out = out[:M]
    return out.reshape(orig_shape[:-1] + (N,))


# --------------------- deterministic synthetic parameters ------------------ #

def make_params(key, infeatures, outfeatures, bit=4, groupsize=-1):
    assert bit == 4
    groups = 1 if groupsize == -1 else infeatures // groupsize
    k_int, k_sc, k_zr, k_b = jax.random.split(key, 4)

    # Integer weights in [0, 16), transposed layout (K, N) like pack()'s intweight.
    intweight = np.asarray(
        jax.random.randint(k_int, (infeatures, outfeatures), 0, 16, dtype=jnp.int32),
        dtype=np.uint32,
    )
    # Pack 8 nibbles per int32 along K (same order as QuantLinear.pack, bit=4).
    iw = intweight.reshape(infeatures // 8, 8, outfeatures)
    shifts = (np.arange(8, dtype=np.uint32) * 4)[None, :, None]
    qweight = np.bitwise_or.reduce(iw << shifts, axis=1).view(np.int32)  # (K//8, N)

    scales = jax.random.uniform(k_sc, (outfeatures, groups, 1), jnp.float32, 0.5, 1.5)
    zeros = jax.random.uniform(k_zr, (outfeatures, groups, 1), jnp.float32, -1.0, 1.0)
    if groups == 1:
        scales = scales.reshape(outfeatures, 1)
        zeros = zeros.reshape(outfeatures, 1)
    bias = jax.random.normal(k_b, (outfeatures,), jnp.float32)

    return intweight, jnp.asarray(qweight), scales, zeros, bias


def reference_forward(x, intweight, scales, zeros, bias, groupsize,
                      round_w_bf16=False):
    K = x.shape[-1]
    N = intweight.shape[1]
    G = 1 if groupsize == -1 else K // groupsize
    sc = np.asarray(scales, np.float32).reshape(N, G).T          # (G, N)
    zr = np.asarray(zeros, np.float32).reshape(N, G).T           # (G, N)
    gidx = np.arange(K) // (K // G)
    w_deq = sc[gidx] * intweight.astype(np.float32) - zr[gidx]   # (K, N)
    if round_w_bf16:   # the direct-dequant kernel path rounds w_deq to bf16
        w_deq = np.asarray(jnp.asarray(w_deq).astype(jnp.bfloat16).astype(jnp.float32))
    x2 = np.asarray(x, np.float32).reshape(-1, K)
    y = x2 @ w_deq + np.asarray(bias, np.float32)[None, :]
    return y.reshape(x.shape[:-1] + (N,))


# ---------------------------------- main ------------------------------------ #

if __name__ == "__main__":
    key = jax.random.PRNGKey(0)
    infeatures, outfeatures = 256, 256

    # (batch, seq, groupsize, tk overrides) — covers the "g1", "epilogue"
    # (decode) and "dequant" (prefill) modes plus multi-K-step accumulation.
    cases = [
        (2, 8, -1, (None, 128)),
        (2, 8, 128, (None, 128)),
        (2, 64, 128, (None, 128)),
    ]

    ok = True
    for idx, (batch, seq, groupsize, tks) in enumerate(cases):
        k_x, k_p = jax.random.split(jax.random.fold_in(key, idx))
        x = jax.random.normal(k_x, (batch, seq, infeatures), jnp.float32)
        # The kernel feeds bf16 activations to the MXU; the reference sees the
        # same (bf16-rounded) activations. Weights/scales stay f32, except in
        # the prefill direct-dequant mode where w_deq is also bf16-rounded.
        x_ref_np = np.asarray(x.astype(jnp.bfloat16).astype(jnp.float32))

        intweight, qweight, scales, zeros, bias = make_params(
            k_p, infeatures, outfeatures, bit=4, groupsize=groupsize)

        M = batch * seq
        round_w = (groupsize != -1) and (M >= 128)   # mirrors mode == "dequant"
        y_ref = reference_forward(x_ref_np, intweight, scales, zeros, bias,
                                  groupsize, round_w_bf16=round_w)

        for tk in tks:
            y = quant_linear_forward(
                x, qweight, scales, zeros, bias, bit=4, groupsize=groupsize, tk=tk
            )
            y = jax.block_until_ready(y)
            ok &= np.allclose(np.asarray(y, np.float32), y_ref, rtol=2e-3, atol=2e-2)

    if ok:
        print("KERNEL_OK")
    else:
        print("KERNEL_MISMATCH")
</pallas_src>

<mosaic_0001>
module attributes {stable_mosaic.version = 11 : i64} {
  func.func @quant4_matmul_kernel(%arg0: i32, %arg1: i32, %arg2: i32, %arg3: memref<16x256xbf16, #tpu.memory_space<vmem>>, %arg4: memref<32x128xi32, #tpu.memory_space<vmem>>, %arg5: memref<1x128xf32, #tpu.memory_space<vmem>>, %arg6: memref<1x128xf32, #tpu.memory_space<vmem>>, %arg7: memref<1x128xf32, #tpu.memory_space<vmem>>, %arg8: memref<16x1xf32, #tpu.memory_space<vmem>>, %arg9: memref<16x128xf32, #tpu.memory_space<vmem>>, %arg10: memref<16x128xf32, #tpu.memory_space<vmem>>) attributes {dimension_semantics = [#tpu.dimension_semantics<parallel>, #tpu.dimension_semantics<parallel>, #tpu.dimension_semantics<arbitrary>], iteration_bounds = array<i64: 1, 2, 1>, scalar_prefetch = 0 : i64, scratch_operands = 1 : i64, tpu.core_type = #tpu.core_type<tc>, window_params = [{transform_indices = @transform_0, window_bounds = array<i64: 16, 256>}, {transform_indices = @transform_1, window_bounds = array<i64: 32, 128>}, {transform_indices = @transform_2, window_bounds = array<i64: 1, 128>}, {transform_indices = @transform_3, window_bounds = array<i64: 1, 128>}, {transform_indices = @transform_4, window_bounds = array<i64: 1, 128>}, {transform_indices = @transform_5, window_bounds = array<i64: 16, 1>}, {transform_indices = @transform_6, window_bounds = array<i64: 16, 128>}]} {
    %c0_i32 = arith.constant 0 : i32
    %0 = arith.cmpi eq, %arg2, %c0_i32 : i32
    %1 = arith.extui %0 : i1 to i32
    %c0_i32_0 = arith.constant 0 : i32
    %2 = arith.cmpi ne, %1, %c0_i32_0 : i32
    scf.if %2 {
      %cst_10 = arith.constant 0.000000e+00 : f32
      %24 = vector.broadcast %cst_10 : f32 to vector<16x128xf32>
      %c0_11 = arith.constant 0 : index
      %c0_12 = arith.constant 0 : index
      %25 = vector.load %arg10[%c0_11, %c0_12] : memref<16x128xf32, #tpu.memory_space<vmem>>, vector<16x128xf32>
      tpu.vector_store %arg10[%c0_11, %c0_12], %24 {strides = array<i32>} : memref<16x128xf32, #tpu.memory_space<vmem>>, vector<16x128xf32>,
    } else {
    }
    %3 = tpu.iota {dimensions = array<i32: 1>} : vector<1x8x1xi32>
    %c4_i32 = arith.constant 4 : i32
    %4 = vector.broadcast %c4_i32 : i32 to vector<1x8x1xi32>
    %5 = arith.muli %3, %4 : vector<1x8x1xi32>
    %c0 = arith.constant 0 : index
    %c0_1 = arith.constant 0 : index
    %6 = vector.load %arg10[%c0, %c0_1] : memref<16x128xf32, #tpu.memory_space<vmem>>, vector<16x128xf32>
    %c0_2 = arith.constant 0 : index
    %c0_3 = arith.constant 0 : index
    %7 = vector.load %arg3[%c0_2, %c0_3] : memref<16x256xbf16, #tpu.memory_space<vmem>>, vector<16x256xbf16>
    %c0_4 = arith.constant 0 : index
    %c0_5 = arith.constant 0 : index
    %8 = vector.load %arg4[%c0_4, %c0_5] : memref<32x128xi32, #tpu.memory_space<vmem>>, vector<32x128xi32>
    %9 = tpu.bitcast %8 : vector<32x128xi32> -> vector<32x128xi32>
    %10 = vector.shape_cast %9 : vector<32x128xi32> to vector<32x1x128xi32>
    %11 = vector.broadcast %10 : vector<32x1x128xi32> to vector<32x8x128xi32>
    %12 = vector.broadcast %5 : vector<1x8x1xi32> to vector<32x8x128xi32>
    %13 = arith.shrui %11, %12 : vector<32x8x128xi32>
    %c15_i32 = arith.constant 15 : i32
    %14 = vector.broadcast %c15_i32 : i32 to vector<32x8x128xi32>
    %15 = arith.andi %13, %14 : vector<32x8x128xi32>
    %16 = vector.shape_cast %15 : vector<32x8x128xi32> to vector<256x128xi32>
    %17 = arith.uitofp %16 : vector<256x128xi32> to vector<256x128xbf16>
    %cst = arith.constant dense<0.000000e+00> : vector<16x128xf32>
    %18 = tpu.matmul %7, %17, %cst {dimension_numbers = #tpu.dot_dimension_numbers<[1], [0], [0], [1], [0, 0, 1, 1], [], []>} : vector<16x256xbf16>, vector<256x128xbf16>, vector<16x128xf32> -> vector<16x128xf32>
    %19 = arith.addf %6, %18 : vector<16x128xf32>
    %c0_6 = arith.constant 0 : index
    %c0_7 = arith.constant 0 : index
    %20 = vector.load %arg10[%c0_6, %c0_7] : memref<16x128xf32, #tpu.memory_space<vmem>>, vector<16x128xf32>
    tpu.vector_store %arg10[%c0_6, %c0_7], %19 {strides = array<i32>} : memref<16x128xf32, #tpu.memory_space<vmem>>, vector<16x128xf32>,
    %c0_i32_8 = arith.constant 0 : i32
    %21 = arith.cmpi eq, %arg2, %c0_i32_8 : i32
    %22 = arith.extui %21 : i1 to i32
    %c0_i32_9 = arith.constant 0 : i32
    %23 = arith.cmpi ne, %22, %c0_i32_9 : i32
    scf.if %23 {
      %c0_10 = arith.constant 0 : index
      %c0_11 = arith.constant 0 : index
      %24 = vector.load %arg5[%c0_10, %c0_11] : memref<1x128xf32, #tpu.memory_space<vmem>>, vector<1x128xf32>
      %c0_12 = arith.constant 0 : index
      %c0_13 = arith.constant 0 : index
      %25 = vector.load %arg6[%c0_12, %c0_13] : memref<1x128xf32, #tpu.memory_space<vmem>>, vector<1x128xf32>
      %c0_14 = arith.constant 0 : index
      %c0_15 = arith.constant 0 : index
      %26 = vector.load %arg8[%c0_14, %c0_15] : memref<16x1xf32, #tpu.memory_space<vmem>>, vector<16x1xf32>
      %c0_16 = arith.constant 0 : index
      %c0_17 = arith.constant 0 : index
      %27 = vector.load %arg10[%c0_16, %c0_17] : memref<16x128xf32, #tpu.memory_space<vmem>>, vector<16x128xf32>
      %28 = vector.broadcast %24 : vector<1x128xf32> to vector<16x128xf32>
      %29 = arith.mulf %28, %27 : vector<16x128xf32>
      %30 = vector.broadcast %25 : vector<1x128xf32> to vector<16x128xf32>
      %31 = vector.broadcast %26 : vector<16x1xf32> to vector<16x128xf32>
      %32 = arith.mulf %30, %31 : vector<16x128xf32>
      %33 = arith.subf %29, %32 : vector<16x128xf32>
      %c0_18 = arith.constant 0 : index
      %c0_19 = arith.constant 0 : index
      %34 = vector.load %arg7[%c0_18, %c0_19] : memref<1x128xf32, #tpu.memory_space<vmem>>, vector<1x128xf32>
      %35 = vector.broadcast %34 : vector<1x128xf32> to vector<16x128xf32>
      %36 = arith.addf %33, %35 : vector<16x128xf32>
      %c0_20 = arith.constant 0 : index
      %c0_21 = arith.constant 0 : index
      %37 = vector.load %arg9[%c0_20, %c0_21] : memref<16x128xf32, #tpu.memory_space<vmem>>, vector<16x128xf32>
      tpu.vector_store %arg9[%c0_20, %c0_21], %36 {strides = array<i32>} : memref<16x128xf32, #tpu.memory_space<vmem>>, vector<16x128xf32>,
    } else {
    }
    return
  }
  func.func @transform_0(%arg0: i32, %arg1: i32, %arg2: i32) -> (i32, i32) {
    %c0_i32 = arith.constant 0 : i32
    return %arg0, %arg2 : i32, i32
  }
  func.func @transform_1(%arg0: i32, %arg1: i32, %arg2: i32) -> (i32, i32) {
    %c0_i32 = arith.constant 0 : i32
    return %arg2, %arg1 : i32, i32
  }
  func.func @transform_2(%arg0: i32, %arg1: i32, %arg2: i32) -> (i32, i32) {
    %c0_i32 = arith.constant 0 : i32
    %c0_i32_0 = arith.constant 0 : i32
    return %c0_i32, %arg1 : i32, i32
  }
  func.func @transform_3(%arg0: i32, %arg1: i32, %arg2: i32) -> (i32, i32) {
    %c0_i32 = arith.constant 0 : i32
    %c0_i32_0 = arith.constant 0 : i32
    return %c0_i32, %arg1 : i32, i32
  }
  func.func @transform_4(%arg0: i32, %arg1: i32, %arg2: i32) -> (i32, i32) {
    %c0_i32 = arith.constant 0 : i32
    %c0_i32_0 = arith.constant 0 : i32
    return %c0_i32, %arg1 : i32, i32
  }
  func.func @transform_5(%arg0: i32, %arg1: i32, %arg2: i32) -> (i32, i32) {
    %c0_i32 = arith.constant 0 : i32
    %c0_i32_0 = arith.constant 0 : i32
    return %arg0, %c0_i32 : i32, i32
  }
  func.func @transform_6(%arg0: i32, %arg1: i32, %arg2: i32) -> (i32, i32) {
    %c0_i32 = arith.constant 0 : i32
    return %arg0, %arg1 : i32, i32
  }
}

</mosaic_0001>

<llo_original>
// kernel: tpu_custom_call.1
$region0: #{tpu_custom_call.1}
  #allocation0 [shape = 'u32[]', space=smem, size = 0x4, offset = 0x4, fixed_abs, tag = 'smem constant byte address 0x4 - core index']
  #allocation1 [shape = 'u32[72,128]{1,0:T(1,128)}', space=vmem, size = 0x9000, scoped, tag = 'internal scratch']
  #allocation2 [shape = 'f32[16,128]{1,0:T(8,128)}', space=vmem, size = 0x2000, scoped, tag = 'scratch operand']
  %s0 = inlined_call_operand.vmem [shape: bf16[16,256], index: 0, kind: input, shape index: {}]
  %s1 = inlined_call_operand.hbm [shape: s32[32,256], index: 1, kind: input, shape index: {}]
  %s2 = inlined_call_operand.vmem [shape: f32[1,256], index: 2, kind: input, shape index: {}]
  %s3 = inlined_call_operand.hbm [shape: f32[1,256], index: 3, kind: input, shape index: {}]
  %s4 = inlined_call_operand.vmem [shape: f32[1,256], index: 4, kind: input, shape index: {}]
  %s5 = inlined_call_operand.vmem [shape: f32[16,1], index: 5, kind: input, shape index: {}]
  %s6 = inlined_call_operand.hbm [shape: f32[16,256], index: 6, kind: output, shape index: {}]
  %s7 = sld [smem:[#allocation0]]
  $region73: #{tpu_custom_call.1} parent=0
    _
  %s9 = ssub.s32 1, %s7
  %s10 = scalar_select 0, %s9, %s7
  $region1: #{tpu_custom_call.1} parent=0
    #allocation3 [shape = 'u8[32768]{0}', space=vmem, size = 0x8000, scoped, tag = 'input window, operand 1']
    #allocation4 [shape = 's32[2]{0}', space=sflag, size = 0x8, scoped, tag = 'scoped memory for tpu_custom_call.1']
    #allocation5 [shape = 's32[2]{0}', space=sflag, size = 0x8, scoped, tag = 'scoped memory for tpu_custom_call.1']
    #allocation6 [shape = 'u8[1024]{0}', space=vmem, size = 0x400, scoped, tag = 'input window, operand 3']
    #allocation7 [shape = 's32[2]{0}', space=sflag, size = 0x8, scoped, tag = 'scoped memory for tpu_custom_call.1']
    #allocation8 [shape = 'u8[16384]{0}', space=vmem, size = 0x4000, scoped, tag = 'output window, operand 0']
    %11 = vsyncpa [#allocation4], 0
    %s12 = scalar_lea.sflag [#allocation4], 1
    %13 = vsyncpa %s12, 0
    %14 = vsyncpa [#allocation7], 0
    %s15 = scalar_lea.sflag [#allocation7], 1
    %16 = vsyncpa %s15, 0
    %17 = vsyncpa [#allocation5], 0
    %s18 = scalar_lea.sflag [#allocation5], 1
    %19 = vsyncpa %s18, 0
    loop: start=0, step=1, limit=4
    $region2: #{tpu_custom_call.1} parent=1 // loop_pre_header
      _
    $region3: #{tpu_custom_call.1} parent=1 // loop_header
      %s21 = sphi 0, %s25
      %p22 = scmp.ge.s32.totalorder %s21, 4
      %s28 = sphi 0, %s47
      %s29 = sphi 0, %s43
      %s30 = sphi 0, %s39
      %s31 = sphi 0, %s28
      %s32 = sphi 0, %s29
      %s33 = sphi 0, %s30
      %s34 = sphi 0, %s31
      %s35 = sphi 0, %s32
      %s36 = sphi 0, %s33
      %s52 = sphi 0, %s54
      %s55 = sphi 0, %s52
      %s56 = sphi 0, %s55
      %s72 = sphi 0, %s56
      %s80 = sphi 0, %s82
      %s83 = sphi 0, %s80
      %s84 = sphi 0, %s83
      %s100 = sphi 0, %s84
      %s106 = sphi 0, %s108
      %s109 = sphi 0, %s106
      %s110 = sphi 0, %s109
      %s126 = sphi 0, %s110
      %s132 = sphi 0, %s134
      %s135 = sphi 0, %s132
      %s136 = sphi 0, %s135
      %s152 = sphi 0, %s136
      %s158 = sphi 0, %s160
      %s161 = sphi 0, %s158
      %s162 = sphi 0, %s161
      %s178 = sphi 0, %s162
      %s184 = sphi 0, %s186
      %s187 = sphi 0, %s184
      %s188 = sphi 0, %s187
      %s204 = sphi 0, %s188
      %s212 = sphi 0, %s214
      %s215 = sphi 0, %s212
      %s216 = sphi 0, %s215
      %s232 = sphi 0, %s216
    $region4: #{tpu_custom_call.1} parent=1 // loop_header_branch
      %24 = sbr.rel (%p22) target = $region8
    $region5: #{tpu_custom_call.1} parent=1 // loop_body
      %s26 = ssub.s32 %s21, 1
      %s27 = ssub.s32 %s21, 2
      %s37 = sadd.s32 1, %s30
      %p38 = scmp.ge.s32.totalorder %s37, 1
      %s39 = scalar_select %p38, 0, %s37
      %s40 = sadd.s32 1, %s29
      %s41 = scalar_select %p38, %s40, %s29
      %p42 = scmp.ge.s32.totalorder %s41, 2
      %s43 = scalar_select %p42, 0, %s41
      %s44 = sadd.s32 1, %s28
      %s45 = scalar_select %p42, %s44, %s28
      %p46 = scmp.ge.s32.totalorder %s45, 1
      %s47 = scalar_select %p46, 0, %s45
      %s48 = ssub.s32 %s28, %s47
      %s49 = ssub.s32 %s30, %s39
      %s50 = sor.u32 %s48, %s49
      %p51 = scmp.eq.s32.totalorder %s50, 0
      %s53 = sadd.s32 %s52, 1
      %s54 = scalar_select %p51, %s52, %s53
      %p57 = pneg %p51
      %p58 = scmp.eq.s32.totalorder %s21, 1
      %p59 = por %p57, %p58
      %p60 = scmp.ne.s32.totalorder %s52, %s55
      %p61 = scmp.eq.s32.totalorder %s21, 0
      %p62 = por %p60, %p61
      %p63 = scmp.ne.s32.totalorder %s52, %s55
      %p64 = scmp.eq.s32.totalorder %s26, 1
      %p65 = por %p63, %p64
      %p66 = scmp.ne.s32.totalorder %s55, %s56
      %p67 = scmp.eq.s32.totalorder %s26, 0
      %p68 = por %p66, %p67
      %p69 = scmp.ne.s32.totalorder %s55, %s56
      %p70 = scmp.eq.s32.totalorder %s27, 1
      %p71 = por %p69, %p70
      %p73 = scmp.ne.s32.totalorder %s56, %s72
      %p74 = scmp.eq.s32.totalorder %s27, 0
      %p75 = por %p73, %p74
      %s76 = ssub.s32 %s30, %s39
      %s77 = ssub.s32 %s29, %s43
      %s78 = sor.u32 %s76, %s77
      %p79 = scmp.eq.s32.totalorder %s78, 0
      %s81 = sadd.s32 %s80, 1
      %s82 = scalar_select %p79, %s80, %s81
      %p85 = pneg %p79
      %p86 = scmp.eq.s32.totalorder %s21, 1
      %p87 = por %p85, %p86
      %p88 = scmp.ne.s32.totalorder %s80, %s83
      %p89 = scmp.eq.s32.totalorder %s21, 0
      %p90 = por %p88, %p89
      %p91 = scmp.ne.s32.totalorder %s80, %s83
      %p92 = scmp.eq.s32.totalorder %s26, 1
      %p93 = por %p91, %p92
      %p94 = scmp.ne.s32.totalorder %s83, %s84
      %p95 = scmp.eq.s32.totalorder %s26, 0
      %p96 = por %p94, %p95
      %p97 = scmp.ne.s32.totalorder %s83, %s84
      %p98 = scmp.eq.s32.totalorder %s27, 1
      %p99 = por %p97, %p98
      %p101 = scmp.ne.s32.totalorder %s84, %s100
      %p102 = scmp.eq.s32.totalorder %s27, 0
      %p103 = por %p101, %p102
      %s104 = ssub.s32 %s29, %s43
      %p105 = scmp.eq.s32.totalorder %s104, 0
      %s107 = sadd.s32 %s106, 1
      %s108 = scalar_select %p105, %s106, %s107
      %p111 = pneg %p105
      %p112 = scmp.eq.s32.totalorder %s21, 1
      %p113 = por %p111, %p112
      %p114 = scmp.ne.s32.totalorder %s106, %s109
      %p115 = scmp.eq.s32.totalorder %s21, 0
      %p116 = por %p114, %p115
      %p117 = scmp.ne.s32.totalorder %s106, %s109
      %p118 = scmp.eq.s32.totalorder %s26, 1
      %p119 = por %p117, %p118
      %p120 = scmp.ne.s32.totalorder %s109, %s110
      %p121 = scmp.eq.s32.totalorder %s26, 0
      %p122 = por %p120, %p121
      %p123 = scmp.ne.s32.totalorder %s109, %s110
      %p124 = scmp.eq.s32.totalorder %s27, 1
      %p125 = por %p123, %p124
      %p127 = scmp.ne.s32.totalorder %s110, %s126
      %p128 = scmp.eq.s32.totalorder %s27, 0
      %p129 = por %p127, %p128
      %s130 = ssub.s32 %s29, %s43
      %p131 = scmp.eq.s32.totalorder %s130, 0
      %s133 = sadd.s32 %s132, 1
      %s134 = scalar_select %p131, %s132, %s133
      %p137 = pneg %p131
      %p138 = scmp.eq.s32.totalorder %s21, 1
      %p139 = por %p137, %p138
      %p140 = scmp.ne.s32.totalorder %s132, %s135
      %p141 = scmp.eq.s32.totalorder %s21, 0
      %p142 = por %p140, %p141
      %p143 = scmp.ne.s32.totalorder %s132, %s135
      %p144 = scmp.eq.s32.totalorder %s26, 1
      %p145 = por %p143, %p144
      %p146 = scmp.ne.s32.totalorder %s135, %s136
      %p147 = scmp.eq.s32.totalorder %s26, 0
      %p148 = por %p146, %p147
      %p149 = scmp.ne.s32.totalorder %s135, %s136
      %p150 = scmp.eq.s32.totalorder %s27, 1
      %p151 = por %p149, %p150
      %p153 = scmp.ne.s32.totalorder %s136, %s152
      %p154 = scmp.eq.s32.totalorder %s27, 0
      %p155 = por %p153, %p154
      %s156 = ssub.s32 %s29, %s43
      %p157 = scmp.eq.s32.totalorder %s156, 0
      %s159 = sadd.s32 %s158, 1
      %s160 = scalar_select %p157, %s158, %s159
      %p163 = pneg %p157
      %p164 = scmp.eq.s32.totalorder %s21, 1
      %p165 = por %p163, %p164
      %p166 = scmp.ne.s32.totalorder %s158, %s161
      %p167 = scmp.eq.s32.totalorder %s21, 0
      %p168 = por %p166, %p167
      %p169 = scmp.ne.s32.totalorder %s158, %s161
      %p170 = scmp.eq.s32.totalorder %s26, 1
      %p171 = por %p169, %p170
      %p172 = scmp.ne.s32.totalorder %s161, %s162
      %p173 = scmp.eq.s32.totalorder %s26, 0
      %p174 = por %p172, %p173
      %p175 = scmp.ne.s32.totalorder %s161, %s162
      %p176 = scmp.eq.s32.totalorder %s27, 1
      %p177 = por %p175, %p176
      %p179 = scmp.ne.s32.totalorder %s162, %s178
      %p180 = scmp.eq.s32.totalorder %s27, 0
      %p181 = por %p179, %p180
      %s182 = ssub.s32 %s28, %s47
      %p183 = scmp.eq.s32.totalorder %s182, 0
      %s185 = sadd.s32 %s184, 1
      %s186 = scalar_select %p183, %s184, %s185
      %p189 = pneg %p183
      %p190 = scmp.eq.s32.totalorder %s21, 1
      %p191 = por %p189, %p190
      %p192 = scmp.ne.s32.totalorder %s184, %s187
      %p193 = scmp.eq.s32.totalorder %s21, 0
      %p194 = por %p192, %p193
      %p195 = scmp.ne.s32.totalorder %s184, %s187
      %p196 = scmp.eq.s32.totalorder %s26, 1
      %p197 = por %p195, %p196
      %p198 = scmp.ne.s32.totalorder %s187, %s188
      %p199 = scmp.eq.s32.totalorder %s26, 0
      %p200 = por %p198, %p199
      %p201 = scmp.ne.s32.totalorder %s187, %s188
      %p202 = scmp.eq.s32.totalorder %s27, 1
      %p203 = por %p201, %p202
      %p205 = scmp.ne.s32.totalorder %s188, %s204
      %p206 = scmp.eq.s32.totalorder %s27, 0
      %p207 = por %p205, %p206
      %s208 = ssub.s32 %s28, %s47
      %s209 = ssub.s32 %s29, %s43
      %s210 = sor.u32 %s208, %s209
      %p211 = scmp.eq.s32.totalorder %s210, 0
      %s213 = sadd.s32 %s212, 1
      %s214 = scalar_select %p211, %s212, %s213
      %p217 = pneg %p211
      %p218 = scmp.eq.s32.totalorder %s21, 1
      %p219 = por %p217, %p218
      %p220 = scmp.ne.s32.totalorder %s212, %s215
      %p221 = scmp.eq.s32.totalorder %s21, 0
      %p222 = por %p220, %p221
      %p223 = scmp.ne.s32.totalorder %s212, %s215
      %p224 = scmp.eq.s32.totalorder %s26, 1
      %p225 = por %p223, %p224
      %p226 = scmp.ne.s32.totalorder %s215, %s216
      %p227 = scmp.eq.s32.totalorder %s26, 0
      %p228 = por %p226, %p227
      %p229 = scmp.ne.s32.totalorder %s215, %s216
      %p230 = scmp.eq.s32.totalorder %s27, 1
      %p231 = por %p229, %p230
      %p233 = scmp.ne.s32.totalorder %s216, %s232
      %p234 = scmp.eq.s32.totalorder %s27, 0
      %p235 = por %p233, %p234
      %p236 = scmp.le.s32.totalorder 1, %s21
      %p237 = scmp.lt.s32.totalorder %s21, 3
      %p238 = pnand %p236, %p237
      %p239 = pneg %p238
      // Predicated region
      $region9: #{tpu_custom_call.1} parent=5 // pred_check
        _
      $region10: #{tpu_custom_call.1} parent=5 // pred_check_branch
        %241 = sbr.rel (%p238) target = $region12
      $region11: #{tpu_custom_call.1} parent=5 // pred_region
        %s242 = ssub.s32 %s21, 1
        // Predicated region
        $region13: #{tpu_custom_call.1} parent=11 // pred_check
          %p243 = pneg %p68
        $region14: #{tpu_custom_call.1} parent=11 // pred_check_branch
          %245 = sbr.rel (%p243) target = $region16
        $region15: #{tpu_custom_call.1} parent=11 // pred_region
          %s246 = smul.u32 2, %s31
          %s247 = smul.u32 2, %s33
          %p248 = scmp.lt.s32.totalorder %s246, 1
          %s249 = scalar_select %p248, %s246, 1
          %p250 = scmp.lt.s32.totalorder %s247, 1
          %s251 = scalar_select %p250, %s247, 1
          %s252 = smul.addr %s249, 2
          %s253 = sadd.s32 %s251, %s252
          %s254 = smul.addr %s253, 4
          %s255 = scalar_lea.vmem %s0, %s254
          %s256 = smul.u32 2, %s31
          %s257 = smul.u32 2, %s33
        $region16: #{tpu_custom_call.1} parent=11 // pred_fallthru
          _
        // Predicated region
        $region17: #{tpu_custom_call.1} parent=11 // pred_check
          %p258 = pneg %p200
        $region18: #{tpu_custom_call.1} parent=11 // pred_check_branch
          %260 = sbr.rel (%p258) target = $region20
        $region19: #{tpu_custom_call.1} parent=11 // pred_region
          %s261 = smul.u32 2, %s31
          %p262 = scmp.lt.s32.totalorder %s261, 1
          %s263 = scalar_select %p262, %s261, 1
          %s264 = smul.addr %s263, 8
          %s265 = scalar_lea.vmem %s5, %s264
          %s266 = smul.u32 2, %s31
        $region20: #{tpu_custom_call.1} parent=11 // pred_fallthru
          _
      $region12: #{tpu_custom_call.1} parent=5 // pred_fallthru
        _
      %p267 = scmp.lt.s32.totalorder %s21, 2
      // Predicated region
      $region21: #{tpu_custom_call.1} parent=5 // pred_check
        %p268 = pneg %p267
      $region22: #{tpu_custom_call.1} parent=5 // pred_check_branch
        %270 = sbr.rel (%p268) target = $region24
      $region23: #{tpu_custom_call.1} parent=5 // pred_region
        // Predicated region
        $region25: #{tpu_custom_call.1} parent=23 // pred_check
          %p271 = pneg %p90
        $region26: #{tpu_custom_call.1} parent=23 // pred_check_branch
          %273 = sbr.rel (%p271) target = $region28
        $region27: #{tpu_custom_call.1} parent=23 // pred_region
          %s274 = sand.u32 %s80, 1
          %s275 = scalar_lea.sflag [#allocation4], %s274
          %s276 = sand.u32 %s80, 1
          %s277 = smul.addr %s276, 32
          %s278 = scalar_lea.vmem [#allocation3], %s277
          %s279 = smul.u32 4, %s30
          %281 = vsyncadd %s275, 0
          %s282 = smul.addr %s279, 2
          %s283 = sadd.s32 %s29, %s282
          %s284 = smul.addr %s283, 8
          %s285 = scalar_lea.hbm %s1, %s284
          %s286 = sshll.u32 %s285, 4
          %s287 = int_to_ptr.hbm [resolvable:$true] %s286
          %s288 = sshll.u32 %s278, 4
          %s289 = int_to_ptr.vmem [resolvable:$true] %s288
          %294 = dma.hbm_to_vmem [thread:$0]  %s287, 512, %s289, %s275, 256, 128, 8
        $region28: #{tpu_custom_call.1} parent=23 // pred_fallthru
          _
        // Predicated region
        $region29: #{tpu_custom_call.1} parent=23 // pred_check
          %p295 = pneg %p116
        $region30: #{tpu_custom_call.1} parent=23 // pred_check_branch
          %297 = sbr.rel (%p295) target = $region32
        $region31: #{tpu_custom_call.1} parent=23 // pred_region
          %p298 = scmp.lt.s32.totalorder %s29, 1
          %s299 = scalar_select %p298, %s29, 1
          %s300 = scalar_lea.vmem %s2, %s299
        $region32: #{tpu_custom_call.1} parent=23 // pred_fallthru
          _
        // Predicated region
        $region33: #{tpu_custom_call.1} parent=23 // pred_check
          %p301 = pneg %p142
        $region34: #{tpu_custom_call.1} parent=23 // pred_check_branch
          %303 = sbr.rel (%p301) target = $region36
        $region35: #{tpu_custom_call.1} parent=23 // pred_region
          %s304 = sand.u32 %s132, 1
          %s305 = scalar_lea.sflag [#allocation7], %s304
          %s306 = sand.u32 %s132, 1
          %s307 = scalar_lea.vmem [#allocation6], %s306
          %309 = vsyncadd %s305, 0
          %s310 = scalar_lea.hbm %s3, %s29
          %s312 = sshll.u32 %s310, 4
          %s313 = int_to_ptr.hbm [resolvable:$true] %s312
          %s314 = sshll.u32 %s307, 4
          %s315 = int_to_ptr.vmem [resolvable:$true] %s314
          %317 = dma.hbm_to_vmem [thread:$0]  %s313, 16, %s315, %s305
        $region36: #{tpu_custom_call.1} parent=23 // pred_fallthru
          _
        // Predicated region
        $region37: #{tpu_custom_call.1} parent=23 // pred_check
          %p318 = pneg %p168
        $region38: #{tpu_custom_call.1} parent=23 // pred_check_branch
          %320 = sbr.rel (%p318) target = $region40
        $region39: #{tpu_custom_call.1} parent=23 // pred_region
          %p321 = scmp.lt.s32.totalorder %s29, 1
          %s322 = scalar_select %p321, %s29, 1
          %s323 = scalar_lea.vmem %s4, %s322
        $region40: #{tpu_custom_call.1} parent=23 // pred_fallthru
          _
      $region24: #{tpu_custom_call.1} parent=5 // pred_fallthru
        _
      %p324 = scmp.le.s32.totalorder 1, %s21
      %p325 = scmp.lt.s32.totalorder %s21, 3
      %p326 = pnand %p324, %p325
      %p327 = pneg %p326
      // Predicated region
      $region41: #{tpu_custom_call.1} parent=5 // pred_check
        _
      $region42: #{tpu_custom_call.1} parent=5 // pred_check_branch
        %329 = sbr.rel (%p326) target = $region44
      $region43: #{tpu_custom_call.1} parent=5 // pred_region
        %s330 = ssub.s32 %s21, 1
        %s331 = sand.u32 %s83, 1
        %s332 = scalar_lea.sflag [#allocation4], %s331
        %s333 = sand.u32 %s83, 1
        %s334 = smul.addr %s333, 32
        %s335 = scalar_lea.vmem [#allocation3], %s334
        // Predicated region
        $region45: #{tpu_custom_call.1} parent=43 // pred_check
          %p336 = pneg %p96
        $region46: #{tpu_custom_call.1} parent=43 // pred_check_branch
          %338 = sbr.rel (%p336) target = $region48
        $region47: #{tpu_custom_call.1} parent=43 // pred_region
          %340 = dma.done %s332, 512
        $region48: #{tpu_custom_call.1} parent=43 // pred_fallthru
          _
        %s341 = sand.u32 %s135, 1
        %s342 = scalar_lea.sflag [#allocation7], %s341
        %s343 = sand.u32 %s135, 1
        %s344 = scalar_lea.vmem [#allocation6], %s343
        // Predicated region
        $region49: #{tpu_custom_call.1} parent=43 // pred_check
          %p345 = pneg %p148
        $region50: #{tpu_custom_call.1} parent=43 // pred_check_branch
          %347 = sbr.rel (%p345) target = $region52
        $region51: #{tpu_custom_call.1} parent=43 // pred_region
          %349 = dma.done %s342, 16
        $region52: #{tpu_custom_call.1} parent=43 // pred_fallthru
          _
        %s350 = smul.u32 2, %s31
        %s351 = smul.u32 2, %s33
        %p352 = scmp.lt.s32.totalorder %s350, 1
        %s353 = scalar_select %p352, %s350, 1
        %p354 = scmp.lt.s32.totalorder %s351, 1
        %s355 = scalar_select %p354, %s351, 1
        %s356 = smul.addr %s353, 2
        %s357 = sadd.s32 %s355, %s356
        %s358 = smul.addr %s357, 4
        %s359 = scalar_lea.vmem %s0, %s358
        %p360 = pneg %p68
        %p361 = pneg %p65
        %s362 = sand.u32 %s83, 1
        %s363 = scalar_lea.sflag [#allocation4], %s362
        %s364 = sand.u32 %s83, 1
        %s365 = smul.addr %s364, 32
        %s366 = scalar_lea.vmem [#allocation3], %s365
        %p367 = pneg %p96
        %p368 = pneg %p93
        %p369 = scmp.lt.s32.totalorder %s32, 1
        %s370 = scalar_select %p369, %s32, 1
        %s371 = scalar_lea.vmem %s2, %s370
        %p372 = pneg %p122
        %p373 = pneg %p119
        %s374 = sand.u32 %s135, 1
        %s375 = scalar_lea.sflag [#allocation7], %s374
        %s376 = sand.u32 %s135, 1
        %s377 = scalar_lea.vmem [#allocation6], %s376
        %p378 = pneg %p148
        %p379 = pneg %p145
        %p380 = scmp.lt.s32.totalorder %s32, 1
        %s381 = scalar_select %p380, %s32, 1
        %s382 = scalar_lea.vmem %s4, %s381
        %p383 = pneg %p174
        %p384 = pneg %p171
        %s385 = smul.u32 2, %s31
        %p386 = scmp.lt.s32.totalorder %s385, 1
        %s387 = scalar_select %p386, %s385, 1
        %s388 = smul.addr %s387, 8
        %s389 = scalar_lea.vmem %s5, %s388
        %p390 = pneg %p200
        %p391 = pneg %p197
        %p392 = pneg %p228
        %p393 = pneg %p225
        %s394 = sand.u32 %s215, 1
        %s395 = scalar_lea.sflag [#allocation5], %s394
        %s396 = sand.u32 %s215, 1
        %s397 = smul.addr %s396, 16
        %s398 = scalar_lea.vmem [#allocation8], %s397
        %s399 = smul.u32 2, %s31
        %s400 = smul.u32 2, %s33
        %p401 = scmp.lt.s32.totalorder %s399, 1
        %s402 = scalar_select %p401, %s399, 1
        %p403 = scmp.lt.s32.totalorder %s400, 1
        %s404 = scalar_select %p403, %s400, 1
        %s405 = smul.addr %s402, 2
        %s406 = sadd.s32 %s404, %s405
        %s407 = smul.addr %s406, 4
        %s408 = scalar_lea.vmem %s0, %s407
        %s409 = smul.u32 2, %s31
        %s410 = smul.u32 2, %s33
        %s411 = smul.u32 4, %s33
        %p412 = scmp.lt.s32.totalorder %s32, 1
        %s413 = scalar_select %p412, %s32, 1
        %s414 = scalar_lea.vmem %s2, %s413
        %p415 = scmp.lt.s32.totalorder %s32, 1
        %s416 = scalar_select %p415, %s32, 1
        %s417 = scalar_lea.vmem %s4, %s416
        %s418 = smul.u32 2, %s31
        %p419 = scmp.lt.s32.totalorder %s418, 1
        %s420 = scalar_select %p419, %s418, 1
        %s421 = smul.addr %s420, 8
        %s422 = scalar_lea.vmem %s5, %s421
        %s423 = smul.u32 2, %s31
        %s424 = smul.u32 2, %s31
        %p425 = scmp.eq.s32.totalorder %s33, 0
        // Predicated region
        $region53: #{tpu_custom_call.1} parent=43 // pred_check
          %p426 = pneg %p425
        $region54: #{tpu_custom_call.1} parent=43 // pred_check_branch
          %428 = sbr.rel (%p426) target = $region56
        $region55: #{tpu_custom_call.1} parent=43 // pred_region
          %429 = vst [vmem:[#allocation2] sm:$0xff] 0.0
          %430 = vst [vmem:[#allocation2 + $0x8] sm:$0xff] 0.0
        $region56: #{tpu_custom_call.1} parent=43 // pred_fallthru
          _
        %v431 = vlaneseq
        %v432 = vshrl.u32 %v431, 7
        %v433 = vmul.u32 %v432, 4
        %v434 = vld [vmem:[#allocation2] sm:$0xff]
        %v435 = vld [vmem:[#allocation2 + $0x8] sm:$0xff]
        %v436 = vld [vmem:[%s408] sm:$0xff]
        %v437 = vld [vmem:[%s408 + $0x8] sm:$0xff]
        %v438 = vld [vmem:[%s335] sm:$0xff]
        %v439 = vld [vmem:[%s335 + $0x8] sm:$0xff]
        %v440 = vld [vmem:[%s335 + $0x10] sm:$0xff]
        %v441 = vld [vmem:[%s335 + $0x18] sm:$0xff]
        %v442 = vrot.slane %v438, 1
        %v443 = vrot.slane %v438, 2
        %v444 = vrot.slane %v438, 3
        %v445 = vrot.slane %v438, 4
        %v446 = vrot.slane %v438, 5
        %v447 = vrot.slane %v438, 6
        %v448 = vrot.slane %v438, 7
        %v449 = vrot.slane %v439, 1
        %v450 = vrot.slane %v439, 2
        %v451 = vrot.slane %v439, 3
        %v452 = vrot.slane %v439, 4
        %v453 = vrot.slane %v439, 5
        %v454 = vrot.slane %v439, 6
        %v455 = vrot.slane %v439, 7
        %v456 = vrot.slane %v440, 1
        %v457 = vrot.slane %v440, 2
        %v458 = vrot.slane %v440, 3
        %v459 = vrot.slane %v440, 4
        %v460 = vrot.slane %v440, 5
        %v461 = vrot.slane %v440, 6
        %v462 = vrot.slane %v440, 7
        %v463 = vrot.slane %v441, 1
        %v464 = vrot.slane %v441, 2
        %v465 = vrot.slane %v441, 3
        %v466 = vrot.slane %v441, 4
        %v467 = vrot.slane %v441, 5
        %v468 = vrot.slane %v441, 6
        %v469 = vrot.slane %v441, 7
        %v470 = vperm.slane %v438, 0
        %v471 = vperm.slane %v442, 0
        %v472 = vperm.slane %v443, 0
        %v473 = vperm.slane %v444, 0
        %v474 = vperm.slane %v445, 0
        %v475 = vperm.slane %v446, 0
        %v476 = vperm.slane %v447, 0
        %v477 = vperm.slane %v448, 0
        %v478 = vperm.slane %v439, 0
        %v479 = vperm.slane %v449, 0
        %v480 = vperm.slane %v450, 0
        %v481 = vperm.slane %v451, 0
        %v482 = vperm.slane %v452, 0
        %v483 = vperm.slane %v453, 0
        %v484 = vperm.slane %v454, 0
        %v485 = vperm.slane %v455, 0
        %v486 = vperm.slane %v440, 0
        %v487 = vperm.slane %v456, 0
        %v488 = vperm.slane %v457, 0
        %v489 = vperm.slane %v458, 0
        %v490 = vperm.slane %v459, 0
        %v491 = vperm.slane %v460, 0
        %v492 = vperm.slane %v461, 0
        %v493 = vperm.slane %v462, 0
        %v494 = vperm.slane %v441, 0
        %v495 = vperm.slane %v463, 0
        %v496 = vperm.slane %v464, 0
        %v497 = vperm.slane %v465, 0
        %v498 = vperm.slane %v466, 0
        %v499 = vperm.slane %v467, 0
        %v500 = vperm.slane %v468, 0
        %v501 = vperm.slane %v469, 0
        %v502 = vshrl.u32 %v470, %v433
        %v503 = vshrl.u32 %v471, %v433
        %v504 = vshrl.u32 %v472, %v433
        %v505 = vshrl.u32 %v473, %v433
        %v506 = vshrl.u32 %v474, %v433
        %v507 = vshrl.u32 %v475, %v433
        %v508 = vshrl.u32 %v476, %v433
        %v509 = vshrl.u32 %v477, %v433
        %v510 = vshrl.u32 %v478, %v433
        %v511 = vshrl.u32 %v479, %v433
        %v512 = vshrl.u32 %v480, %v433
        %v513 = vshrl.u32 %v481, %v433
        %v514 = vshrl.u32 %v482, %v433
        %v515 = vshrl.u32 %v483, %v433
        %v516 = vshrl.u32 %v484, %v433
        %v517 = vshrl.u32 %v485, %v433
        %v518 = vshrl.u32 %v486, %v433
        %v519 = vshrl.u32 %v487, %v433
        %v520 = vshrl.u32 %v488, %v433
        %v521 = vshrl.u32 %v489, %v433
        %v522 = vshrl.u32 %v490, %v433
        %v523 = vshrl.u32 %v491, %v433
        %v524 = vshrl.u32 %v492, %v433
        %v525 = vshrl.u32 %v493, %v433
        %v526 = vshrl.u32 %v494, %v433
        %v527 = vshrl.u32 %v495, %v433
        %v528 = vshrl.u32 %v496, %v433
        %v529 = vshrl.u32 %v497, %v433
        %v530 = vshrl.u32 %v498, %v433
        %v531 = vshrl.u32 %v499, %v433
        %v532 = vshrl.u32 %v500, %v433
        %v533 = vshrl.u32 %v501, %v433
        %v534 = vand.u32 %v502, 15
        %v535 = vand.u32 %v503, 15
        %v536 = vand.u32 %v504, 15
        %v537 = vand.u32 %v505, 15
        %v538 = vand.u32 %v506, 15
        %v539 = vand.u32 %v507, 15
        %v540 = vand.u32 %v508, 15
        %v541 = vand.u32 %v509, 15
        %v542 = vand.u32 %v510, 15
        %v543 = vand.u32 %v511, 15
        %v544 = vand.u32 %v512, 15
        %v545 = vand.u32 %v513, 15
        %v546 = vand.u32 %v514, 15
        %v547 = vand.u32 %v515, 15
        %v548 = vand.u32 %v516, 15
        %v549 = vand.u32 %v517, 15
        %v550 = vand.u32 %v518, 15
        %v551 = vand.u32 %v519, 15
        %v552 = vand.u32 %v520, 15
        %v553 = vand.u32 %v521, 15
        %v554 = vand.u32 %v522, 15
        %v555 = vand.u32 %v523, 15
        %v556 = vand.u32 %v524, 15
        %v557 = vand.u32 %v525, 15
        %v558 = vand.u32 %v526, 15
        %v559 = vand.u32 %v527, 15
        %v560 = vand.u32 %v528, 15
        %v561 = vand.u32 %v529, 15
        %v562 = vand.u32 %v530, 15
        %v563 = vand.u32 %v531, 15
        %v564 = vand.u32 %v532, 15
        %v565 = vand.u32 %v533, 15
        %v566 = vshrl.u32 %v534, 16
        %v567 = vand.u32 %v534, 65535
        %v568 = vcvt.s32.f32 %v566
        %v569 = vmul.f32 %v568, 65536.0
        %v570 = vcvt.s32.f32 %v567
        %v571 = vadd.f32 %v569, %v570
        %v572 = vshrl.u32 %v535, 16
        %v573 = vand.u32 %v535, 65535
        %v574 = vcvt.s32.f32 %v572
        %v575 = vmul.f32 %v574, 65536.0
        %v576 = vcvt.s32.f32 %v573
        %v577 = vadd.f32 %v575, %v576
        %v578 = vshrl.u32 %v536, 16
        %v579 = vand.u32 %v536, 65535
        %v580 = vcvt.s32.f32 %v578
        %v581 = vmul.f32 %v580, 65536.0
        %v582 = vcvt.s32.f32 %v579
        %v583 = vadd.f32 %v581, %v582
        %v584 = vshrl.u32 %v537, 16
        %v585 = vand.u32 %v537, 65535
        %v586 = vcvt.s32.f32 %v584
        %v587 = vmul.f32 %v586, 65536.0
        %v588 = vcvt.s32.f32 %v585
        %v589 = vadd.f32 %v587, %v588
        %v590 = vshrl.u32 %v538, 16
        %v591 = vand.u32 %v538, 65535
        %v592 = vcvt.s32.f32 %v590
        %v593 = vmul.f32 %v592, 65536.0
        %v594 = vcvt.s32.f32 %v591
        %v595 = vadd.f32 %v593, %v594
        %v596 = vshrl.u32 %v539, 16
        %v597 = vand.u32 %v539, 65535
        %v598 = vcvt.s32.f32 %v596
        %v599 = vmul.f32 %v598, 65536.0
        %v600 = vcvt.s32.f32 %v597
        %v601 = vadd.f32 %v599, %v600
        %v602 = vshrl.u32 %v540, 16
        %v603 = vand.u32 %v540, 65535
        %v604 = vcvt.s32.f32 %v602
        %v605 = vmul.f32 %v604, 65536.0
        %v606 = vcvt.s32.f32 %v603
        %v607 = vadd.f32 %v605, %v606
        %v608 = vshrl.u32 %v541, 16
        %v609 = vand.u32 %v541, 65535
        %v610 = vcvt.s32.f32 %v608
        %v611 = vmul.f32 %v610, 65536.0
        %v612 = vcvt.s32.f32 %v609
        %v613 = vadd.f32 %v611, %v612
        %v614 = vshrl.u32 %v542, 16
        %v615 = vand.u32 %v542, 65535
        %v616 = vcvt.s32.f32 %v614
        %v617 = vmul.f32 %v616, 65536.0
        %v618 = vcvt.s32.f32 %v615
        %v619 = vadd.f32 %v617, %v618
        %v620 = vshrl.u32 %v543, 16
        %v621 = vand.u32 %v543, 65535
        %v622 = vcvt.s32.f32 %v620
        %v623 = vmul.f32 %v622, 65536.0
        %v624 = vcvt.s32.f32 %v621
        %v625 = vadd.f32 %v623, %v624
        %v626 = vshrl.u32 %v544, 16
        %v627 = vand.u32 %v544, 65535
        %v628 = vcvt.s32.f32 %v626
        %v629 = vmul.f32 %v628, 65536.0
        %v630 = vcvt.s32.f32 %v627
        %v631 = vadd.f32 %v629, %v630
        %v632 = vshrl.u32 %v545, 16
        %v633 = vand.u32 %v545, 65535
        %v634 = vcvt.s32.f32 %v632
        %v635 = vmul.f32 %v634, 65536.0
        %v636 = vcvt.s32.f32 %v633
        %v637 = vadd.f32 %v635, %v636
        %v638 = vshrl.u32 %v546, 16
        %v639 = vand.u32 %v546, 65535
        %v640 = vcvt.s32.f32 %v638
        %v641 = vmul.f32 %v640, 65536.0
        %v642 = vcvt.s32.f32 %v639
        %v643 = vadd.f32 %v641, %v642
        %v644 = vshrl.u32 %v547, 16
        %v645 = vand.u32 %v547, 65535
        %v646 = vcvt.s32.f32 %v644
        %v647 = vmul.f32 %v646, 65536.0
        %v648 = vcvt.s32.f32 %v645
        %v649 = vadd.f32 %v647, %v648
        %v650 = vshrl.u32 %v548, 16
        %v651 = vand.u32 %v548, 65535
        %v652 = vcvt.s32.f32 %v650
        %v653 = vmul.f32 %v652, 65536.0
        %v654 = vcvt.s32.f32 %v651
        %v655 = vadd.f32 %v653, %v654
        %v656 = vshrl.u32 %v549, 16
        %v657 = vand.u32 %v549, 65535
        %v658 = vcvt.s32.f32 %v656
        %v659 = vmul.f32 %v658, 65536.0
        %v660 = vcvt.s32.f32 %v657
        %v661 = vadd.f32 %v659, %v660
        %v662 = vshrl.u32 %v550, 16
        %v663 = vand.u32 %v550, 65535
        %v664 = vcvt.s32.f32 %v662
        %v665 = vmul.f32 %v664, 65536.0
        %v666 = vcvt.s32.f32 %v663
        %v667 = vadd.f32 %v665, %v666
        %v668 = vshrl.u32 %v551, 16
        %v669 = vand.u32 %v551, 65535
        %v670 = vcvt.s32.f32 %v668
        %v671 = vmul.f32 %v670, 65536.0
        %v672 = vcvt.s32.f32 %v669
        %v673 = vadd.f32 %v671, %v672
        %v674 = vshrl.u32 %v552, 16
        %v675 = vand.u32 %v552, 65535
        %v676 = vcvt.s32.f32 %v674
        %v677 = vmul.f32 %v676, 65536.0
        %v678 = vcvt.s32.f32 %v675
        %v679 = vadd.f32 %v677, %v678
        %v680 = vshrl.u32 %v553, 16
        %v681 = vand.u32 %v553, 65535
        %v682 = vcvt.s32.f32 %v680
        %v683 = vmul.f32 %v682, 65536.0
        %v684 = vcvt.s32.f32 %v681
        %v685 = vadd.f32 %v683, %v684
        %v686 = vshrl.u32 %v554, 16
        %v687 = vand.u32 %v554, 65535
        %v688 = vcvt.s32.f32 %v686
        %v689 = vmul.f32 %v688, 65536.0
        %v690 = vcvt.s32.f32 %v687
        %v691 = vadd.f32 %v689, %v690
        %v692 = vshrl.u32 %v555, 16
        %v693 = vand.u32 %v555, 65535
        %v694 = vcvt.s32.f32 %v692
        %v695 = vmul.f32 %v694, 65536.0
        %v696 = vcvt.s32.f32 %v693
        %v697 = vadd.f32 %v695, %v696
        %v698 = vshrl.u32 %v556, 16
        %v699 = vand.u32 %v556, 65535
        %v700 = vcvt.s32.f32 %v698
        %v701 = vmul.f32 %v700, 65536.0
        %v702 = vcvt.s32.f32 %v699
        %v703 = vadd.f32 %v701, %v702
        %v704 = vshrl.u32 %v557, 16
        %v705 = vand.u32 %v557, 65535
        %v706 = vcvt.s32.f32 %v704
        %v707 = vmul.f32 %v706, 65536.0
        %v708 = vcvt.s32.f32 %v705
        %v709 = vadd.f32 %v707, %v708
        %v710 = vshrl.u32 %v558, 16
        %v711 = vand.u32 %v558, 65535
        %v712 = vcvt.s32.f32 %v710
        %v713 = vmul.f32 %v712, 65536.0
        %v714 = vcvt.s32.f32 %v711
        %v715 = vadd.f32 %v713, %v714
        %v716 = vshrl.u32 %v559, 16
        %v717 = vand.u32 %v559, 65535
        %v718 = vcvt.s32.f32 %v716
        %v719 = vmul.f32 %v718, 65536.0
        %v720 = vcvt.s32.f32 %v717
        %v721 = vadd.f32 %v719, %v720
        %v722 = vshrl.u32 %v560, 16
        %v723 = vand.u32 %v560, 65535
        %v724 = vcvt.s32.f32 %v722
        %v725 = vmul.f32 %v724, 65536.0
        %v726 = vcvt.s32.f32 %v723
        %v727 = vadd.f32 %v725, %v726
        %v728 = vshrl.u32 %v561, 16
        %v729 = vand.u32 %v561, 65535
        %v730 = vcvt.s32.f32 %v728
        %v731 = vmul.f32 %v730, 65536.0
        %v732 = vcvt.s32.f32 %v729
        %v733 = vadd.f32 %v731, %v732
        %v734 = vshrl.u32 %v562, 16
        %v735 = vand.u32 %v562, 65535
        %v736 = vcvt.s32.f32 %v734
        %v737 = vmul.f32 %v736, 65536.0
        %v738 = vcvt.s32.f32 %v735
        %v739 = vadd.f32 %v737, %v738
        %v740 = vshrl.u32 %v563, 16
        %v741 = vand.u32 %v563, 65535
        %v742 = vcvt.s32.f32 %v740
        %v743 = vmul.f32 %v742, 65536.0
        %v744 = vcvt.s32.f32 %v741
        %v745 = vadd.f32 %v743, %v744
        %v746 = vshrl.u32 %v564, 16
        %v747 = vand.u32 %v564, 65535
        %v748 = vcvt.s32.f32 %v746
        %v749 = vmul.f32 %v748, 65536.0
        %v750 = vcvt.s32.f32 %v747
        %v751 = vadd.f32 %v749, %v750
        %v752 = vshrl.u32 %v565, 16
        %v753 = vand.u32 %v565, 65535
        %v754 = vcvt.s32.f32 %v752
        %v755 = vmul.f32 %v754, 65536.0
        %v756 = vcvt.s32.f32 %v753
        %v757 = vadd.f32 %v755, %v756
        %v758 = vpack.c.bf16 %v577, %v571
        %v759 = vpack.c.bf16 %v589, %v583
        %v760 = vpack.c.bf16 %v601, %v595
        %v761 = vpack.c.bf16 %v613, %v607
        %v762 = vpack.c.bf16 %v625, %v619
        %v763 = vpack.c.bf16 %v637, %v631
        %v764 = vpack.c.bf16 %v649, %v643
        %v765 = vpack.c.bf16 %v661, %v655
        %v766 = vpack.c.bf16 %v673, %v667
        %v767 = vpack.c.bf16 %v685, %v679
        %v768 = vpack.c.bf16 %v697, %v691
        %v769 = vpack.c.bf16 %v709, %v703
        %v770 = vpack.c.bf16 %v721, %v715
        %v771 = vpack.c.bf16 %v733, %v727
        %v772 = vpack.c.bf16 %v745, %v739
        %v773 = vpack.c.bf16 %v757, %v751
        %v776 = vunpack.c.l.b16 %v436
        %v777 = vunpack.c.h.b16 %v436
        %v778 = vunpack.c.l.b16 %v437
        %v779 = vunpack.c.h.b16 %v437
        %v780 = vpack.c.b16 %v778, %v776
        %v781 = vpack.c.b16 %v779, %v777
        %784 = vmatpush.bf16.msra.mxu0 %v765
        %785 = vmatpush.bf16.msra.mxu0 %v764
        %786 = vmatpush.bf16.msra.mxu0 %v763
        %787 = vmatpush.bf16.msra.mxu0 %v762
        %788 = vmatpush.bf16.msra.mxu0 %v761
        %789 = vmatpush.bf16.msra.mxu0 %v760
        %790 = vmatpush.bf16.msra.mxu0 %v759
        %791 = vmatpush.bf16.msra.mxu0 %v758
        %792 = vmatmul.bf16.gmra.mxu0 %v780
        %v793 = vpop.f32.mrf.mxu0
        %v794 = vadd.f32 0.0, %v793
        %v795 = vpop.f32.mrf.mxu0
        %v796 = vadd.f32 0.0, %v795
        %797 = vdwg.mxu0
        %798 = vmatpush.bf16.msra.mxu0 %v773
        %799 = vmatpush.bf16.msra.mxu0 %v772
        %800 = vmatpush.bf16.msra.mxu0 %v771
        %801 = vmatpush.bf16.msra.mxu0 %v770
        %802 = vmatpush.bf16.msra.mxu0 %v769
        %803 = vmatpush.bf16.msra.mxu0 %v768
        %804 = vmatpush.bf16.msra.mxu0 %v767
        %805 = vmatpush.bf16.msra.mxu0 %v766
        %806 = vmatmul.bf16.gmra.mxu0 %v781
        %v807 = vpop.f32.mrf.mxu0
        %v808 = vadd.f32 %v794, %v807
        %v809 = vpop.f32.mrf.mxu0
        %v810 = vadd.f32 %v796, %v809
        %811 = vdwg.mxu0
        %v812 = vadd.f32 %v434, %v808
        %v813 = vadd.f32 %v435, %v810
        %814 = vst [vmem:[#allocation2] sm:$0xff] %v812
        %815 = vst [vmem:[#allocation2 + $0x8] sm:$0xff] %v813
        // Predicated region
        $region57: #{tpu_custom_call.1} parent=43 // pred_check
          %p816 = pneg %p425
        $region58: #{tpu_custom_call.1} parent=43 // pred_check_branch
          %818 = sbr.rel (%p816) target = $region60
        $region59: #{tpu_custom_call.1} parent=43 // pred_region
          %v819 = vld [vmem:[%s414] sm:$0x1]
          %v820 = vld [vmem:[%s344] sm:$0x1]
          %v821 = vld [vmem:[%s422] sm:$0xff]
          %v822 = vld [vmem:[%s422 + $0x8] sm:$0xff]
          %v823 = vld [vmem:[#allocation2] sm:$0xff]
          %v824 = vld [vmem:[#allocation2 + $0x8] sm:$0xff]
          %v826 = vperm.slane %v819, 0
          %v828 = vmul.f32 %v826, %v823
          %v829 = vmul.f32 %v826, %v824
          %v831 = vperm.slane %v820, 0
          %834 = vset.pattern.permute.xlu0 0
          %835 = vperm.xlu0 %834, %v821
          %v836 = vpop.permute.xlu0 %835
          %839 = vset.pattern.permute.xlu0 0
          %840 = vperm.xlu0 %839, %v822
          %v841 = vpop.permute.xlu0 %840
          %v843 = vmul.f32 %v831, %v836
          %v844 = vmul.f32 %v831, %v841
          %v845 = vsub.f32 %v828, %v843
          %v846 = vsub.f32 %v829, %v844
          %v847 = vld [vmem:[%s417] sm:$0x1]
          %v849 = vperm.slane %v847, 0
          %v851 = vadd.f32 %v845, %v849
          %v852 = vadd.f32 %v846, %v849
          %853 = vst [vmem:[%s398] sm:$0xff] %v851
          %854 = vst [vmem:[%s398 + $0x8] sm:$0xff] %v852
        $region60: #{tpu_custom_call.1} parent=43 // pred_fallthru
          _
        %s855 = sand.u32 %s215, 1
        %s856 = scalar_lea.sflag [#allocation5], %s855
        %s857 = sand.u32 %s215, 1
        %s858 = smul.addr %s857, 16
        %s859 = scalar_lea.vmem [#allocation8], %s858
        // Predicated region
        $region61: #{tpu_custom_call.1} parent=43 // pred_check
          %p860 = pneg %p225
        $region62: #{tpu_custom_call.1} parent=43 // pred_check_branch
          %862 = sbr.rel (%p860) target = $region64
        $region63: #{tpu_custom_call.1} parent=43 // pred_region
          %s863 = smul.u32 2, %s31
          %865 = vsyncadd %s856, 0
          %s866 = smul.addr %s863, 2
          %s867 = sadd.s32 %s32, %s866
          %s868 = smul.addr %s867, 8
          %s869 = scalar_lea.hbm %s6, %s868
          %s870 = sshll.u32 %s859, 4
          %s871 = int_to_ptr.vmem [resolvable:$true] %s870
          %s872 = sshll.u32 %s869, 4
          %s873 = int_to_ptr.hbm [resolvable:$true] %s872
          %878 = dma.vmem_to_hbm [thread:$0]  %s871, 256, %s873, %s856, 128, 256, 8
        $region64: #{tpu_custom_call.1} parent=43 // pred_fallthru
          _
      $region44: #{tpu_custom_call.1} parent=5 // pred_fallthru
        _
      %p879 = scmp.le.s32.totalorder 2, %s21
      // Predicated region
      $region65: #{tpu_custom_call.1} parent=5 // pred_check
        %p880 = pneg %p879
      $region66: #{tpu_custom_call.1} parent=5 // pred_check_branch
        %882 = sbr.rel (%p880) target = $region68
      $region67: #{tpu_custom_call.1} parent=5 // pred_region
        %s883 = ssub.s32 %s21, 2
        // Predicated region
        $region69: #{tpu_custom_call.1} parent=67 // pred_check
          %p884 = pneg %p231
        $region70: #{tpu_custom_call.1} parent=67 // pred_check_branch
          %886 = sbr.rel (%p884) target = $region72
        $region71: #{tpu_custom_call.1} parent=67 // pred_region
          %s887 = sand.u32 %s216, 1
          %s888 = scalar_lea.sflag [#allocation5], %s887
          %s889 = sand.u32 %s216, 1
          %s890 = smul.addr %s889, 16
          %s891 = scalar_lea.vmem [#allocation8], %s890
          %893 = dma.done %s888, 256
        $region72: #{tpu_custom_call.1} parent=67 // pred_fallthru
          _
      $region68: #{tpu_custom_call.1} parent=5 // pred_fallthru
        _
    $region6: #{tpu_custom_call.1} parent=1 // loop_footer
      %s25 = sadd.s32 1, %s21
    $region7: #{tpu_custom_call.1} parent=1 // loop_footer_branch
      %20 = sbr.rel target = $region3
    $region8: #{tpu_custom_call.1} parent=1 // loop_exit
      _
    %894 = vsyncpa [#allocation4], 1
    %s895 = scalar_lea.sflag [#allocation4], 1
    %896 = vsyncpa %s895, 1
    %897 = vsyncpa [#allocation7], 1
    %s898 = scalar_lea.sflag [#allocation7], 1
    %899 = vsyncpa %s898, 1
    %900 = vsyncpa [#allocation5], 1
    %s901 = scalar_lea.sflag [#allocation5], 1
    %902 = vsyncpa %s901, 1

</llo_original>
